<compile_context>
chip_gen: v7x
topology: tpu7x:2x2x1
jax: 0.10.0
libtpu: 0.0.40
codegen_flags: <defaults>
</compile_context>

<pallas_src>
import jax
import jax.numpy as jnp
from jax import lax
from jax.experimental import pallas as pl
from jax.experimental.pallas import tpu as pltpu


def _resblock_kernel(xp_ref, xres_ref, w1_ref, b1_ref, w2_ref, b2_ref, o_ref):
    """ResBlock forward for TN batch images per grid step (lane-packed).

    xp_ref   : (TN, H+2, (W+2)*Cin)  zero-padded input, (x, channel) packed on lanes
    xres_ref : (TN, H,   W*Cin)      unpadded input (residual branch)
    w1_ref   : (3, (W+2)*Cin, W*Cmid) per-ky block-Toeplitz 3x3-conv weights
    b1_ref   : (1, W*Cmid)
    w2_ref   : (W*Cmid, W*Cout)      block-diagonal 1x1-conv weights
    b2_ref   : (1, W*Cout)
    o_ref    : (TN, H, W*Cout)       lane-dense output
    """
    tn, hp, wpc = xp_ref.shape
    h = hp - 2
    wco = w2_ref.shape[1]

    # ReLU on the padded input (padding is zeros; ReLU(0)=0, so this equals
    # pad(ReLU(x))).  Kept f32 (v5e has no bf16 VPU path).
    a = jnp.maximum(xp_ref[...], 0.0)

    # 3x3 conv == 3 fat MXU matmuls (one per ky).  The kx taps and the channel
    # contraction are folded into K=(W+2)*Cin via the block-Toeplitz weight;
    # the output minor dim is W*Cmid (lane-dense).
    acc = jnp.dot(a[:, 0:h, :].reshape(tn * h, wpc), w1_ref[0],
                  preferred_element_type=jnp.float32)
    acc = acc + jnp.dot(a[:, 1:h + 1, :].reshape(tn * h, wpc), w1_ref[1],
                        preferred_element_type=jnp.float32)
    acc = acc + jnp.dot(a[:, 2:h + 2, :].reshape(tn * h, wpc), w1_ref[2],
                        preferred_element_type=jnp.float32)
    acc = acc + b1_ref[...]

    # ReLU, then 1x1 conv as one block-diagonal matmul over the lane axis.
    hmid = jnp.maximum(acc, 0.0)
    out = jnp.dot(hmid, w2_ref[...], preferred_element_type=jnp.float32)
    out = out + b2_ref[...]

    # Residual add; write the output in the lane-dense flattened layout.
    res = xres_ref[...].reshape(tn * h, wco)
    o_ref[...] = (res + out).reshape(tn, h, wco).astype(o_ref.dtype)


def _pick_batch_tile(n, h):
    """Largest batch tile that still leaves >= 2 grid steps (megacore /
    pipeline overlap) while keeping the matmul M dim (tile * H) moderate."""
    best = 1
    for t in range(1, n + 1):
        if n % t == 0 and (n // t) >= 2 and t * h <= 512:
            best = t
    return best


@jax.jit
def resblock_pallas(x_nchw, w1_hwio, b1, w2_io, b2):
    """x_nchw: (N, C, H, W) float32, PyTorch convention."""
    n, c, hh, ww = x_nchw.shape
    cin = c
    cmid = w1_hwio.shape[3]
    cout = w2_io.shape[1]
    assert cout == cin, "residual requires in_channels == out_channels"
    dt = x_nchw.dtype

    # ---------------- layout glue (one-time, not the hot path) -------------
    x_nhwc = jnp.transpose(x_nchw, (0, 2, 3, 1))
    x_flat = x_nhwc.reshape(n, hh, ww * cin)                      # residual, lane-packed
    xp = jnp.pad(x_nhwc, ((0, 0), (1, 1), (1, 1), (0, 0)))
    xp_flat = xp.reshape(n, hh + 2, (ww + 2) * cin)               # padded, lane-packed

    # 3x3 conv -> per-ky block-Toeplitz weights over the (x, channel) lane axis:
    #   W1[ky, xi*Cin+ci, xo*Cmid+co] = w1[ky, xi-xo, ci, co]  for 0 <= xi-xo < 3
    shifts = jnp.stack([jnp.eye(ww + 2, ww, k=-kx, dtype=dt) for kx in range(3)])
    w1_toep = jnp.einsum('axw,yaio->yxiwo', shifts, w1_hwio)      # (3, W+2, Cin, W, Cmid)
    w1_toep = w1_toep.reshape(3, (ww + 2) * cin, ww * cmid)

    # 1x1 conv -> block-diagonal weights over the lane axis.
    w2_blk = (jnp.eye(ww, dtype=dt)[:, None, :, None]
              * w2_io[None, :, None, :]).reshape(ww * cmid, ww * cout)

    b1_row = jnp.tile(b1, ww).reshape(1, ww * cmid)
    b2_row = jnp.tile(b2, ww).reshape(1, ww * cout)

    tn = _pick_batch_tile(n, hh)

    # Note: the constant operands (w1_toep, b1, w2_blk, b2) could additionally
    # use pipeline_mode=pl.Buffered(1) to drop their second buffer; at these
    # sizes (<300 KiB total) the VMEM saving is negligible, so it is omitted.
    out_flat = pl.pallas_call(
        _resblock_kernel,
        out_shape=jax.ShapeDtypeStruct((n, hh, ww * cout), dt),
        grid_spec=pltpu.PrefetchScalarGridSpec(
            num_scalar_prefetch=0,
            grid=(n // tn,),
            in_specs=[
                pl.BlockSpec((tn, hh + 2, (ww + 2) * cin), lambda i: (i, 0, 0)),
                pl.BlockSpec((tn, hh, ww * cin), lambda i: (i, 0, 0)),
                pl.BlockSpec((3, (ww + 2) * cin, ww * cmid), lambda i: (0, 0, 0)),
                pl.BlockSpec((1, ww * cmid), lambda i: (0, 0)),
                pl.BlockSpec((ww * cmid, ww * cout), lambda i: (0, 0)),
                pl.BlockSpec((1, ww * cout), lambda i: (0, 0)),
            ],
            out_specs=pl.BlockSpec((tn, hh, ww * cout), lambda i: (i, 0, 0)),
        ),
        compiler_params=pltpu.CompilerParams(
            dimension_semantics=("parallel",)),
    )(xp_flat, x_flat, w1_toep, b1_row, w2_blk, b2_row)

    # Lane-packed (N, H, W*Cout) -> NHWC -> NCHW to match PyTorch output.
    out_nhwc = out_flat.reshape(n, hh, ww, cout)
    return jnp.transpose(out_nhwc, (0, 3, 1, 2))


def resblock_reference(x_nchw, w1_hwio, b1, w2_io, b2):
    """Pure-JAX reference (mirrors the PyTorch module)."""
    x = jnp.transpose(x_nchw, (0, 2, 3, 1))                       # NHWC
    a = jax.nn.relu(x)
    y = lax.conv_general_dilated(
        a, w1_hwio, window_strides=(1, 1), padding="SAME",
        dimension_numbers=("NHWC", "HWIO", "NHWC")) + b1
    y = jax.nn.relu(y)
    y = jnp.einsum("nhwc,cd->nhwd", y, w2_io) + b2
    out = x + y
    return jnp.transpose(out, (0, 3, 1, 2))                       # NCHW


def init_params(key, in_channels, mid_channels, out_channels):
    """Deterministic init (PyTorch-style uniform fan-in bounds)."""
    k1, k2, k3, k4 = jax.random.split(key, 4)
    bound1 = 1.0 / jnp.sqrt(in_channels * 3 * 3)
    bound2 = 1.0 / jnp.sqrt(mid_channels * 1 * 1)
    w1 = jax.random.uniform(k1, (3, 3, in_channels, mid_channels),
                            jnp.float32, -bound1, bound1)         # HWIO
    b1 = jax.random.uniform(k2, (mid_channels,), jnp.float32, -bound1, bound1)
    w2 = jax.random.uniform(k3, (mid_channels, out_channels),
                            jnp.float32, -bound2, bound2)         # IO (1x1)
    b2 = jax.random.uniform(k4, (out_channels,), jnp.float32, -bound2, bound2)
    return w1, b1, w2, b2


if __name__ == "__main__":
    # Small shapes consistent with the module: batch=2, C_in=C_out=8, 16x16.
    # (W * C = 128 -> lane-dense packed layout in the kernel.)
    N, C, H, W = 2, 8, 16, 16
    mid = C  # mid_channels defaults to out_channels

    key = jax.random.PRNGKey(0)
    kx_, kp = jax.random.split(key)
    x = jax.random.normal(kx_, (N, C, H, W), jnp.float32)   # PyTorch NCHW input
    w1, b1, w2, b2 = init_params(kp, C, mid, C)

    out = resblock_pallas(x, w1, b1, w2, b2)
    out = jax.block_until_ready(out)

    ref = resblock_reference(x, w1, b1, w2, b2)
    assert out.shape == (N, C, H, W)
    err = jnp.max(jnp.abs(out - ref))
    assert jnp.allclose(out, ref, atol=1e-4, rtol=1e-4), f"max err {err}"

    print("KERNEL_OK")
</pallas_src>

<mosaic_0001>
module attributes {stable_mosaic.version = 11 : i64} {
  func.func @_resblock_kernel(%arg0: i32, %arg1: memref<1x18x144xf32, #tpu.memory_space<vmem>>, %arg2: memref<1x16x128xf32, #tpu.memory_space<vmem>>, %arg3: memref<3x144x128xf32, #tpu.memory_space<vmem>>, %arg4: memref<1x128xf32, #tpu.memory_space<vmem>>, %arg5: memref<128x128xf32, #tpu.memory_space<vmem>>, %arg6: memref<1x128xf32, #tpu.memory_space<vmem>>, %arg7: memref<1x16x128xf32, #tpu.memory_space<vmem>>) attributes {dimension_semantics = [#tpu.dimension_semantics<parallel>], iteration_bounds = array<i64: 2>, scalar_prefetch = 0 : i64, scratch_operands = 0 : i64, tpu.core_type = #tpu.core_type<tc>, window_params = [{transform_indices = @transform_0, window_bounds = array<i64: 1, 18, 144>}, {transform_indices = @transform_1, window_bounds = array<i64: 1, 16, 128>}, {pipeline_mode = #tpu.pipeline_mode<synchronous>, transform_indices = @transform_2, window_bounds = array<i64: 3, 144, 128>}, {pipeline_mode = #tpu.pipeline_mode<synchronous>, transform_indices = @transform_3, window_bounds = array<i64: 1, 128>}, {pipeline_mode = #tpu.pipeline_mode<synchronous>, transform_indices = @transform_4, window_bounds = array<i64: 128, 128>}, {pipeline_mode = #tpu.pipeline_mode<synchronous>, transform_indices = @transform_5, window_bounds = array<i64: 1, 128>}, {transform_indices = @transform_6, window_bounds = array<i64: 1, 16, 128>}]} {
    %c0 = arith.constant 0 : index
    %c0_0 = arith.constant 0 : index
    %c0_1 = arith.constant 0 : index
    %0 = vector.load %arg1[%c0, %c0_0, %c0_1] : memref<1x18x144xf32, #tpu.memory_space<vmem>>, vector<1x18x144xf32>
    %cst = arith.constant 0.000000e+00 : f32
    %1 = vector.broadcast %cst : f32 to vector<1x18x144xf32>
    %2 = arith.maximumf %0, %1 : vector<1x18x144xf32>
    %3 = vector.extract_strided_slice %2 {offsets = [0, 0, 0], sizes = [1, 16, 144], strides = [1, 1, 1]} : vector<1x18x144xf32> to vector<1x16x144xf32>
    %4 = vector.shape_cast %3 : vector<1x16x144xf32> to vector<16x144xf32>
    %c0_2 = arith.constant 0 : index
    %c0_3 = arith.constant 0 : index
    %c0_4 = arith.constant 0 : index
    %5 = vector.load %arg3[%c0_2, %c0_3, %c0_4] : memref<3x144x128xf32, #tpu.memory_space<vmem>>, vector<1x144x128xf32>
    %6 = vector.shape_cast %5 : vector<1x144x128xf32> to vector<144x128xf32>
    %cst_5 = arith.constant dense<0.000000e+00> : vector<16x128xf32>
    %7 = tpu.matmul %4, %6, %cst_5 {dimension_numbers = #tpu.dot_dimension_numbers<[1], [0], [0], [1], [0, 0, 1, 1], [], []>} : vector<16x144xf32>, vector<144x128xf32>, vector<16x128xf32> -> vector<16x128xf32>
    %8 = vector.extract_strided_slice %2 {offsets = [0, 1, 0], sizes = [1, 16, 144], strides = [1, 1, 1]} : vector<1x18x144xf32> to vector<1x16x144xf32>
    %9 = vector.shape_cast %8 : vector<1x16x144xf32> to vector<16x144xf32>
    %c1 = arith.constant 1 : index
    %c0_6 = arith.constant 0 : index
    %c0_7 = arith.constant 0 : index
    %10 = vector.load %arg3[%c1, %c0_6, %c0_7] : memref<3x144x128xf32, #tpu.memory_space<vmem>>, vector<1x144x128xf32>
    %11 = vector.shape_cast %10 : vector<1x144x128xf32> to vector<144x128xf32>
    %cst_8 = arith.constant dense<0.000000e+00> : vector<16x128xf32>
    %12 = tpu.matmul %9, %11, %cst_8 {dimension_numbers = #tpu.dot_dimension_numbers<[1], [0], [0], [1], [0, 0, 1, 1], [], []>} : vector<16x144xf32>, vector<144x128xf32>, vector<16x128xf32> -> vector<16x128xf32>
    %13 = arith.addf %7, %12 : vector<16x128xf32>
    %14 = vector.extract_strided_slice %2 {offsets = [0, 2, 0], sizes = [1, 16, 144], strides = [1, 1, 1]} : vector<1x18x144xf32> to vector<1x16x144xf32>
    %15 = vector.shape_cast %14 : vector<1x16x144xf32> to vector<16x144xf32>
    %c2 = arith.constant 2 : index
    %c0_9 = arith.constant 0 : index
    %c0_10 = arith.constant 0 : index
    %16 = vector.load %arg3[%c2, %c0_9, %c0_10] : memref<3x144x128xf32, #tpu.memory_space<vmem>>, vector<1x144x128xf32>
    %17 = vector.shape_cast %16 : vector<1x144x128xf32> to vector<144x128xf32>
    %cst_11 = arith.constant dense<0.000000e+00> : vector<16x128xf32>
    %18 = tpu.matmul %15, %17, %cst_11 {dimension_numbers = #tpu.dot_dimension_numbers<[1], [0], [0], [1], [0, 0, 1, 1], [], []>} : vector<16x144xf32>, vector<144x128xf32>, vector<16x128xf32> -> vector<16x128xf32>
    %19 = arith.addf %13, %18 : vector<16x128xf32>
    %c0_12 = arith.constant 0 : index
    %c0_13 = arith.constant 0 : index
    %20 = vector.load %arg4[%c0_12, %c0_13] : memref<1x128xf32, #tpu.memory_space<vmem>>, vector<1x128xf32>
    %21 = vector.broadcast %20 : vector<1x128xf32> to vector<16x128xf32>
    %22 = arith.addf %19, %21 : vector<16x128xf32>
    %cst_14 = arith.constant 0.000000e+00 : f32
    %23 = vector.broadcast %cst_14 : f32 to vector<16x128xf32>
    %24 = arith.maximumf %22, %23 : vector<16x128xf32>
    %c0_15 = arith.constant 0 : index
    %c0_16 = arith.constant 0 : index
    %25 = vector.load %arg5[%c0_15, %c0_16] : memref<128x128xf32, #tpu.memory_space<vmem>>, vector<128x128xf32>
    %cst_17 = arith.constant dense<0.000000e+00> : vector<16x128xf32>
    %26 = tpu.matmul %24, %25, %cst_17 {dimension_numbers = #tpu.dot_dimension_numbers<[1], [0], [0], [1], [0, 0, 1, 1], [], []>} : vector<16x128xf32>, vector<128x128xf32>, vector<16x128xf32> -> vector<16x128xf32>
    %c0_18 = arith.constant 0 : index
    %c0_19 = arith.constant 0 : index
    %27 = vector.load %arg6[%c0_18, %c0_19] : memref<1x128xf32, #tpu.memory_space<vmem>>, vector<1x128xf32>
    %28 = vector.broadcast %27 : vector<1x128xf32> to vector<16x128xf32>
    %29 = arith.addf %26, %28 : vector<16x128xf32>
    %c0_20 = arith.constant 0 : index
    %c0_21 = arith.constant 0 : index
    %c0_22 = arith.constant 0 : index
    %30 = vector.load %arg2[%c0_20, %c0_21, %c0_22] : memref<1x16x128xf32, #tpu.memory_space<vmem>>, vector<1x16x128xf32>
    %31 = vector.shape_cast %30 : vector<1x16x128xf32> to vector<16x128xf32>
    %32 = arith.addf %31, %29 : vector<16x128xf32>
    %33 = vector.shape_cast %32 : vector<16x128xf32> to vector<1x16x128xf32>
    %c0_23 = arith.constant 0 : index
    %c0_24 = arith.constant 0 : index
    %c0_25 = arith.constant 0 : index
    %34 = vector.load %arg7[%c0_23, %c0_24, %c0_25] : memref<1x16x128xf32, #tpu.memory_space<vmem>>, vector<1x16x128xf32>
    tpu.vector_store %arg7[%c0_23, %c0_24, %c0_25], %33 {strides = array<i32>} : memref<1x16x128xf32, #tpu.memory_space<vmem>>, vector<1x16x128xf32>,
    return
  }
  func.func @transform_0(%arg0: i32) -> (i32, i32, i32) {
    %c0_i32 = arith.constant 0 : i32
    %c0_i32_0 = arith.constant 0 : i32
    %c0_i32_1 = arith.constant 0 : i32
    return %arg0, %c0_i32, %c0_i32_0 : i32, i32, i32
  }
  func.func @transform_1(%arg0: i32) -> (i32, i32, i32) {
    %c0_i32 = arith.constant 0 : i32
    %c0_i32_0 = arith.constant 0 : i32
    %c0_i32_1 = arith.constant 0 : i32
    return %arg0, %c0_i32, %c0_i32_0 : i32, i32, i32
  }
  func.func @transform_2(%arg0: i32) -> (i32, i32, i32) {
    %c0_i32 = arith.constant 0 : i32
    %c0_i32_0 = arith.constant 0 : i32
    %c0_i32_1 = arith.constant 0 : i32
    %c0_i32_2 = arith.constant 0 : i32
    return %c0_i32, %c0_i32_0, %c0_i32_1 : i32, i32, i32
  }
  func.func @transform_3(%arg0: i32) -> (i32, i32) {
    %c0_i32 = arith.constant 0 : i32
    %c0_i32_0 = arith.constant 0 : i32
    %c0_i32_1 = arith.constant 0 : i32
    return %c0_i32, %c0_i32_0 : i32, i32
  }
  func.func @transform_4(%arg0: i32) -> (i32, i32) {
    %c0_i32 = arith.constant 0 : i32
    %c0_i32_0 = arith.constant 0 : i32
    %c0_i32_1 = arith.constant 0 : i32
    return %c0_i32, %c0_i32_0 : i32, i32
  }
  func.func @transform_5(%arg0: i32) -> (i32, i32) {
    %c0_i32 = arith.constant 0 : i32
    %c0_i32_0 = arith.constant 0 : i32
    %c0_i32_1 = arith.constant 0 : i32
    return %c0_i32, %c0_i32_0 : i32, i32
  }
  func.func @transform_6(%arg0: i32) -> (i32, i32, i32) {
    %c0_i32 = arith.constant 0 : i32
    %c0_i32_0 = arith.constant 0 : i32
    %c0_i32_1 = arith.constant 0 : i32
    return %arg0, %c0_i32, %c0_i32_0 : i32, i32, i32
  }
}

</mosaic_0001>

<llo_original>
// kernel: tile.13
$region0: #{tile.13}
  #allocation0 [shape = 's32[1]{0}', space=sflag, size = 0x4, scoped, tag = 'scoped memory for tile.13']
  %s0 = inlined_call_operand.vmem [shape: f32[8], index: 0, kind: input, shape index: {}]
  %s1 = inlined_call_operand.vmem [shape: f32[16,8], index: 1, kind: output, shape index: {}]
  // Predicated region
  $region2: #{tile.13} parent=0 // pred_check
    _
  $region3: #{tile.13} parent=0 // pred_check_branch
    %3 = sbr.rel (0) target = $region5
  $region4: #{tile.13} parent=0 // pred_region
    _
  $region5: #{tile.13} parent=0 // pred_fallthru
    _
  %v4 = vld [vmem:[%s0] ss:$0 sm:$0xff]
  %5 = vst [vmem:[%s1] sm:$0xff] %v4
  %s6 = scalar_lea.vmem %s1, 8
  %7 = vst [vmem:[%s6] sm:$0xff] %v4

// kernel: tile.14
$region0: #{tile.14}
  %s0 = inlined_call_operand.vmem [shape: f32[16,8], index: 0, kind: input, shape index: {}]
  %s1 = inlined_call_operand.vmem [shape: f32[1,128], index: 1, kind: output, shape index: {}]
  $region1: #{tile.14} parent=0
    #allocation0 [shape = 'u8[4096]{0}', space=vmem, size = 0x1000, scoped, tag = 'scoped mem for output reshape']
    %v2 = vld [vmem:[%s0] sm:$0x1]
    %vm3 = vcmask 64512
    %4 = vst.msk [vmem:[#allocation0] sm:$0x1] %vm3, %v2
    %s5 = scalar_lea.vmem %s0, 15
    %v6 = vld [vmem:[%s5] sm:$0x1]
    %7 = vrot.lane.b32.xlu0 %v6, 120
    %v8 = vpop.permute.xlu0 %7
    %vm9 = vcmask 1048512
    %10 = vst.msk [vmem:[#allocation0] sm:$0x1] %vm9, %v8
    %s11 = scalar_lea.vmem %s0, 14
    %v12 = vld [vmem:[%s11] sm:$0x1]
    %13 = vrot.lane.b32.xlu0 %v12, 112
    %v14 = vpop.permute.xlu0 %13
    %vm15 = vcmask 982912
    %16 = vst.msk [vmem:[#allocation0] sm:$0x1] %vm15, %v14
    %s17 = scalar_lea.vmem %s0, 13
    %v18 = vld [vmem:[%s17] sm:$0x1]
    %19 = vrot.lane.b32.xlu0 %v18, 104
    %v20 = vpop.permute.xlu0 %19
    %vm21 = vcmask 917312
    %22 = vst.msk [vmem:[#allocation0] sm:$0x1] %vm21, %v20
    %s23 = scalar_lea.vmem %s0, 12
    %v24 = vld [vmem:[%s23] sm:$0x1]
    %25 = vrot.lane.b32.xlu0 %v24, 96
    %v26 = vpop.permute.xlu0 %25
    %vm27 = vcmask 851712
    %28 = vst.msk [vmem:[#allocation0] sm:$0x1] %vm27, %v26
    %s29 = scalar_lea.vmem %s0, 11
    %v30 = vld [vmem:[%s29] sm:$0x1]
    %31 = vrot.lane.b32.xlu0 %v30, 88
    %v32 = vpop.permute.xlu0 %31
    %vm33 = vcmask 786112
    %34 = vst.msk [vmem:[#allocation0] sm:$0x1] %vm33, %v32
    %s35 = scalar_lea.vmem %s0, 10
    %v36 = vld [vmem:[%s35] sm:$0x1]
    %37 = vrot.lane.b32.xlu0 %v36, 80
    %v38 = vpop.permute.xlu0 %37
    %vm39 = vcmask 720512
    %40 = vst.msk [vmem:[#allocation0] sm:$0x1] %vm39, %v38
    %s41 = scalar_lea.vmem %s0, 9
    %v42 = vld [vmem:[%s41] sm:$0x1]
    %43 = vrot.lane.b32.xlu0 %v42, 72
    %v44 = vpop.permute.xlu0 %43
    %vm45 = vcmask 654912
    %46 = vst.msk [vmem:[#allocation0] sm:$0x1] %vm45, %v44
    %s47 = scalar_lea.vmem %s0, 8
    %v48 = vld [vmem:[%s47] sm:$0x1]
    %49 = vrot.lane.b32.xlu0 %v48, 64
    %v50 = vpop.permute.xlu0 %49
    %vm51 = vcmask 589312
    %52 = vst.msk [vmem:[#allocation0] sm:$0x1] %vm51, %v50
    %s53 = scalar_lea.vmem %s0, 7
    %v54 = vld [vmem:[%s53] sm:$0x1]
    %55 = vrot.lane.b32.xlu0 %v54, 56
    %v56 = vpop.permute.xlu0 %55
    %vm57 = vcmask 523712
    %58 = vst.msk [vmem:[#allocation0] sm:$0x1] %vm57, %v56
    %s59 = scalar_lea.vmem %s0, 6
    %v60 = vld [vmem:[%s59] sm:$0x1]
    %61 = vrot.lane.b32.xlu0 %v60, 48
    %v62 = vpop.permute.xlu0 %61
    %vm63 = vcmask 458112
    %64 = vst.msk [vmem:[#allocation0] sm:$0x1] %vm63, %v62
    %s65 = scalar_lea.vmem %s0, 5
    %v66 = vld [vmem:[%s65] sm:$0x1]
    %67 = vrot.lane.b32.xlu0 %v66, 40
    %v68 = vpop.permute.xlu0 %67
    %vm69 = vcmask 392512
    %70 = vst.msk [vmem:[#allocation0] sm:$0x1] %vm69, %v68
    %s71 = scalar_lea.vmem %s0, 4
    %v72 = vld [vmem:[%s71] sm:$0x1]
    %73 = vrot.lane.b32.xlu0 %v72, 32
    %v74 = vpop.permute.xlu0 %73
    %vm75 = vcmask 326912
    %76 = vst.msk [vmem:[#allocation0] sm:$0x1] %vm75, %v74
    %s77 = scalar_lea.vmem %s0, 3
    %v78 = vld [vmem:[%s77] sm:$0x1]
    %79 = vrot.lane.b32.xlu0 %v78, 24
    %v80 = vpop.permute.xlu0 %79
    %vm81 = vcmask 261312
    %82 = vst.msk [vmem:[#allocation0] sm:$0x1] %vm81, %v80
    %s83 = scalar_lea.vmem %s0, 2
    %v84 = vld [vmem:[%s83] sm:$0x1]
    %85 = vrot.lane.b32.xlu0 %v84, 16
    %v86 = vpop.permute.xlu0 %85
    %vm87 = vcmask 195712
    %88 = vst.msk [vmem:[#allocation0] sm:$0x1] %vm87, %v86
    %s89 = scalar_lea.vmem %s0, 1
    %v90 = vld [vmem:[%s89] sm:$0x1]
    %91 = vrot.lane.b32.xlu0 %v90, 8
    %v92 = vpop.permute.xlu0 %91
    %vm93 = vcmask 130112
    %94 = vst.msk [vmem:[#allocation0] sm:$0x1] %vm93, %v92
    %s96 = sshllo.u32 0, 1
    %v98 = vld [vmem:[#allocation0] sm:%s96]
    %s99 = sshllo.u32 0, 1
    %100 = vst [vmem:[%s1] sm:%s99] %v98

// kernel: resblock_pallas.1
$region0: #{resblock_pallas.1}
  #allocation0 [shape = 'u32[]', space=smem, size = 0x4, offset = 0x4, fixed_abs, tag = 'smem constant byte address 0x4 - core index']
  #allocation1 [shape = 'u32[144,128]{1,0:T(1,128)}', space=vmem, size = 0x12000, scoped, tag = 'internal scratch']
  %s0 = inlined_call_operand.vmem [shape: f32[2,18,144], index: 0, kind: input, shape index: {}]
  %s1 = inlined_call_operand.vmem [shape: f32[2,16,128], index: 1, kind: input, shape index: {}]
  %s2 = inlined_call_operand.vmem [shape: f32[3,144,128], index: 2, kind: input, shape index: {}]
  %s3 = inlined_call_operand.vmem [shape: f32[1,128], index: 3, kind: input, shape index: {}]
  %s4 = inlined_call_operand.vmem [shape: f32[128,128], index: 4, kind: input, shape index: {}]
  %s5 = inlined_call_operand.vmem [shape: f32[1,128], index: 5, kind: input, shape index: {}]
  %s6 = inlined_call_operand.vmem [shape: f32[2,16,128], index: 6, kind: output, shape index: {}]
  %s7 = sld [smem:[#allocation0]]
  $region57: #{resblock_pallas.1} parent=0
    _
  %s9 = ssub.s32 1, %s7
  %s10 = scalar_select 0, %s9, %s7
  loop: start=0, step=1, limit=4
  $region2: #{resblock_pallas.1} parent=0 // loop_pre_header
    _
  $region3: #{resblock_pallas.1} parent=0 // loop_header
    %s12 = sphi 0, %s16
    %p13 = scmp.ge.s32.totalorder %s12, 4
    %s22 = sphi 0, %s24
    %s25 = sphi 0, %s22
    %s26 = sphi 0, %s25
    %s42 = sphi 0, %s26
    %s48 = sphi 0, %s50
    %s51 = sphi 0, %s48
    %s52 = sphi 0, %s51
    %s68 = sphi 0, %s52
    %s72 = sphi 0, %s72
    %s74 = sphi 0, %s72
    %s75 = sphi 0, %s74
    %s89 = sphi 0, %s75
    %s93 = sphi 0, %s93
    %s95 = sphi 0, %s93
    %s96 = sphi 0, %s95
    %s110 = sphi 0, %s96
    %s114 = sphi 0, %s114
    %s116 = sphi 0, %s114
    %s117 = sphi 0, %s116
    %s131 = sphi 0, %s117
    %s135 = sphi 0, %s135
    %s137 = sphi 0, %s135
    %s138 = sphi 0, %s137
    %s152 = sphi 0, %s138
    %s158 = sphi 0, %s160
    %s161 = sphi 0, %s158
    %s162 = sphi 0, %s161
    %s178 = sphi 0, %s162
  $region4: #{resblock_pallas.1} parent=0 // loop_header_branch
    %15 = sbr.rel (%p13) target = $region8
  $region5: #{resblock_pallas.1} parent=0 // loop_body
    %s17 = ssub.s32 %s12, 1
    %s18 = ssub.s32 %s12, 2
    %s19 = sadd.s32 %s12, 1
    %s20 = ssub.s32 %s12, %s19
    %p21 = scmp.eq.s32.totalorder %s20, 0
    %s23 = sadd.s32 %s22, 1
    %s24 = scalar_select %p21, %s22, %s23
    %p27 = pneg %p21
    %p28 = scmp.eq.s32.totalorder %s12, 1
    %p29 = por %p27, %p28
    %p30 = scmp.ne.s32.totalorder %s22, %s25
    %p31 = scmp.eq.s32.totalorder %s12, 0
    %p32 = por %p30, %p31
    %p33 = scmp.ne.s32.totalorder %s22, %s25
    %p34 = scmp.eq.s32.totalorder %s17, 1
    %p35 = por %p33, %p34
    %p36 = scmp.ne.s32.totalorder %s25, %s26
    %p37 = scmp.eq.s32.totalorder %s17, 0
    %p38 = por %p36, %p37
    %p39 = scmp.ne.s32.totalorder %s25, %s26
    %p40 = scmp.eq.s32.totalorder %s18, 1
    %p41 = por %p39, %p40
    %p43 = scmp.ne.s32.totalorder %s26, %s42
    %p44 = scmp.eq.s32.totalorder %s18, 0
    %p45 = por %p43, %p44
    %s46 = ssub.s32 %s12, %s19
    %p47 = scmp.eq.s32.totalorder %s46, 0
    %s49 = sadd.s32 %s48, 1
    %s50 = scalar_select %p47, %s48, %s49
    %p53 = pneg %p47
    %p54 = scmp.eq.s32.totalorder %s12, 1
    %p55 = por %p53, %p54
    %p56 = scmp.ne.s32.totalorder %s48, %s51
    %p57 = scmp.eq.s32.totalorder %s12, 0
    %p58 = por %p56, %p57
    %p59 = scmp.ne.s32.totalorder %s48, %s51
    %p60 = scmp.eq.s32.totalorder %s17, 1
    %p61 = por %p59, %p60
    %p62 = scmp.ne.s32.totalorder %s51, %s52
    %p63 = scmp.eq.s32.totalorder %s17, 0
    %p64 = por %p62, %p63
    %p65 = scmp.ne.s32.totalorder %s51, %s52
    %p66 = scmp.eq.s32.totalorder %s18, 1
    %p67 = por %p65, %p66
    %p69 = scmp.ne.s32.totalorder %s52, %s68
    %p70 = scmp.eq.s32.totalorder %s18, 0
    %p71 = por %p69, %p70
    %s73 = sadd.s32 %s72, 1
    %p76 = scmp.eq.s32.totalorder %s12, 1
    %p77 = scmp.ne.s32.totalorder %s72, %s74
    %p78 = scmp.eq.s32.totalorder %s12, 0
    %p79 = por %p77, %p78
    %p80 = scmp.ne.s32.totalorder %s72, %s74
    %p81 = scmp.eq.s32.totalorder %s17, 1
    %p82 = por %p80, %p81
    %p83 = scmp.ne.s32.totalorder %s74, %s75
    %p84 = scmp.eq.s32.totalorder %s17, 0
    %p85 = por %p83, %p84
    %p86 = scmp.ne.s32.totalorder %s74, %s75
    %p87 = scmp.eq.s32.totalorder %s18, 1
    %p88 = por %p86, %p87
    %p90 = scmp.ne.s32.totalorder %s75, %s89
    %p91 = scmp.eq.s32.totalorder %s18, 0
    %p92 = por %p90, %p91
    %s94 = sadd.s32 %s93, 1
    %p97 = scmp.eq.s32.totalorder %s12, 1
    %p98 = scmp.ne.s32.totalorder %s93, %s95
    %p99 = scmp.eq.s32.totalorder %s12, 0
    %p100 = por %p98, %p99
    %p101 = scmp.ne.s32.totalorder %s93, %s95
    %p102 = scmp.eq.s32.totalorder %s17, 1
    %p103 = por %p101, %p102
    %p104 = scmp.ne.s32.totalorder %s95, %s96
    %p105 = scmp.eq.s32.totalorder %s17, 0
    %p106 = por %p104, %p105
    %p107 = scmp.ne.s32.totalorder %s95, %s96
    %p108 = scmp.eq.s32.totalorder %s18, 1
    %p109 = por %p107, %p108
    %p111 = scmp.ne.s32.totalorder %s96, %s110
    %p112 = scmp.eq.s32.totalorder %s18, 0
    %p113 = por %p111, %p112
    %s115 = sadd.s32 %s114, 1
    %p118 = scmp.eq.s32.totalorder %s12, 1
    %p119 = scmp.ne.s32.totalorder %s114, %s116
    %p120 = scmp.eq.s32.totalorder %s12, 0
    %p121 = por %p119, %p120
    %p122 = scmp.ne.s32.totalorder %s114, %s116
    %p123 = scmp.eq.s32.totalorder %s17, 1
    %p124 = por %p122, %p123
    %p125 = scmp.ne.s32.totalorder %s116, %s117
    %p126 = scmp.eq.s32.totalorder %s17, 0
    %p127 = por %p125, %p126
    %p128 = scmp.ne.s32.totalorder %s116, %s117
    %p129 = scmp.eq.s32.totalorder %s18, 1
    %p130 = por %p128, %p129
    %p132 = scmp.ne.s32.totalorder %s117, %s131
    %p133 = scmp.eq.s32.totalorder %s18, 0
    %p134 = por %p132, %p133
    %s136 = sadd.s32 %s135, 1
    %p139 = scmp.eq.s32.totalorder %s12, 1
    %p140 = scmp.ne.s32.totalorder %s135, %s137
    %p141 = scmp.eq.s32.totalorder %s12, 0
    %p142 = por %p140, %p141
    %p143 = scmp.ne.s32.totalorder %s135, %s137
    %p144 = scmp.eq.s32.totalorder %s17, 1
    %p145 = por %p143, %p144
    %p146 = scmp.ne.s32.totalorder %s137, %s138
    %p147 = scmp.eq.s32.totalorder %s17, 0
    %p148 = por %p146, %p147
    %p149 = scmp.ne.s32.totalorder %s137, %s138
    %p150 = scmp.eq.s32.totalorder %s18, 1
    %p151 = por %p149, %p150
    %p153 = scmp.ne.s32.totalorder %s138, %s152
    %p154 = scmp.eq.s32.totalorder %s18, 0
    %p155 = por %p153, %p154
    %s156 = ssub.s32 %s12, %s19
    %p157 = scmp.eq.s32.totalorder %s156, 0
    %s159 = sadd.s32 %s158, 1
    %s160 = scalar_select %p157, %s158, %s159
    %p163 = pneg %p157
    %p164 = scmp.eq.s32.totalorder %s12, 1
    %p165 = por %p163, %p164
    %p166 = scmp.ne.s32.totalorder %s158, %s161
    %p167 = scmp.eq.s32.totalorder %s12, 0
    %p168 = por %p166, %p167
    %p169 = scmp.ne.s32.totalorder %s158, %s161
    %p170 = scmp.eq.s32.totalorder %s17, 1
    %p171 = por %p169, %p170
    %p172 = scmp.ne.s32.totalorder %s161, %s162
    %p173 = scmp.eq.s32.totalorder %s17, 0
    %p174 = por %p172, %p173
    %p175 = scmp.ne.s32.totalorder %s161, %s162
    %p176 = scmp.eq.s32.totalorder %s18, 1
    %p177 = por %p175, %p176
    %p179 = scmp.ne.s32.totalorder %s162, %s178
    %p180 = scmp.eq.s32.totalorder %s18, 0
    %p181 = por %p179, %p180
    %p182 = scmp.le.s32.totalorder 1, %s12
    %p183 = scmp.lt.s32.totalorder %s12, 3
    %p184 = pnand %p182, %p183
    %p185 = pneg %p184
    // Predicated region
    $region9: #{resblock_pallas.1} parent=5 // pred_check
      _
    $region10: #{resblock_pallas.1} parent=5 // pred_check_branch
      %187 = sbr.rel (%p184) target = $region12
    $region11: #{resblock_pallas.1} parent=5 // pred_region
      %s188 = ssub.s32 %s12, 1
      // Predicated region
      $region13: #{resblock_pallas.1} parent=11 // pred_check
        %p189 = pneg %p85
      $region14: #{resblock_pallas.1} parent=11 // pred_check_branch
        %191 = sbr.rel (%p189) target = $region16
      $region15: #{resblock_pallas.1} parent=11 // pred_region
        _
      $region16: #{resblock_pallas.1} parent=11 // pred_fallthru
        _
      // Predicated region
      $region17: #{resblock_pallas.1} parent=11 // pred_check
        %p192 = pneg %p106
      $region18: #{resblock_pallas.1} parent=11 // pred_check_branch
        %194 = sbr.rel (%p192) target = $region20
      $region19: #{resblock_pallas.1} parent=11 // pred_region
        _
      $region20: #{resblock_pallas.1} parent=11 // pred_fallthru
        _
      // Predicated region
      $region21: #{resblock_pallas.1} parent=11 // pred_check
        %p195 = pneg %p127
      $region22: #{resblock_pallas.1} parent=11 // pred_check_branch
        %197 = sbr.rel (%p195) target = $region24
      $region23: #{resblock_pallas.1} parent=11 // pred_region
        _
      $region24: #{resblock_pallas.1} parent=11 // pred_fallthru
        _
      // Predicated region
      $region25: #{resblock_pallas.1} parent=11 // pred_check
        %p198 = pneg %p148
      $region26: #{resblock_pallas.1} parent=11 // pred_check_branch
        %200 = sbr.rel (%p198) target = $region28
      $region27: #{resblock_pallas.1} parent=11 // pred_region
        _
      $region28: #{resblock_pallas.1} parent=11 // pred_fallthru
        _
    $region12: #{resblock_pallas.1} parent=5 // pred_fallthru
      _
    %p201 = scmp.lt.s32.totalorder %s12, 2
    // Predicated region
    $region29: #{resblock_pallas.1} parent=5 // pred_check
      %p202 = pneg %p201
    $region30: #{resblock_pallas.1} parent=5 // pred_check_branch
      %204 = sbr.rel (%p202) target = $region32
    $region31: #{resblock_pallas.1} parent=5 // pred_region
      // Predicated region
      $region33: #{resblock_pallas.1} parent=31 // pred_check
        %p205 = pneg %p32
      $region34: #{resblock_pallas.1} parent=31 // pred_check_branch
        %207 = sbr.rel (%p205) target = $region36
      $region35: #{resblock_pallas.1} parent=31 // pred_region
        %p208 = scmp.lt.s32.totalorder %s12, 1
        %s209 = scalar_select %p208, %s12, 1
        %s210 = smul.addr %s209, 6
        %s211 = smul.addr %s210, 8
        %s212 = scalar_lea.vmem %s0, %s211
      $region36: #{resblock_pallas.1} parent=31 // pred_fallthru
        _
      // Predicated region
      $region37: #{resblock_pallas.1} parent=31 // pred_check
        %p213 = pneg %p58
      $region38: #{resblock_pallas.1} parent=31 // pred_check_branch
        %215 = sbr.rel (%p213) target = $region40
      $region39: #{resblock_pallas.1} parent=31 // pred_region
        %p216 = scmp.lt.s32.totalorder %s12, 1
        %s217 = scalar_select %p216, %s12, 1
        %s218 = smul.addr %s217, 2
        %s219 = smul.addr %s218, 8
        %s220 = scalar_lea.vmem %s1, %s219
      $region40: #{resblock_pallas.1} parent=31 // pred_fallthru
        _
    $region32: #{resblock_pallas.1} parent=5 // pred_fallthru
      _
    %p221 = scmp.le.s32.totalorder 1, %s12
    %p222 = scmp.lt.s32.totalorder %s12, 3
    %p223 = pnand %p221, %p222
    %p224 = pneg %p223
    // Predicated region
    $region41: #{resblock_pallas.1} parent=5 // pred_check
      _
    $region42: #{resblock_pallas.1} parent=5 // pred_check_branch
      %226 = sbr.rel (%p223) target = $region44
    $region43: #{resblock_pallas.1} parent=5 // pred_region
      %s227 = ssub.s32 %s12, 1
      %p228 = scmp.lt.s32.totalorder %s17, 1
      %s229 = scalar_select %p228, %s17, 1
      %s230 = smul.addr %s229, 6
      %s231 = smul.addr %s230, 8
      %s232 = scalar_lea.vmem %s0, %s231
      %p233 = pneg %p38
      %p234 = pneg %p35
      %p235 = scmp.lt.s32.totalorder %s17, 1
      %s236 = scalar_select %p235, %s17, 1
      %s237 = smul.addr %s236, 2
      %s238 = smul.addr %s237, 8
      %s239 = scalar_lea.vmem %s1, %s238
      %p240 = pneg %p64
      %p241 = pneg %p61
      %p242 = pneg %p85
      %p243 = pneg %p82
      %p244 = pneg %p106
      %p245 = pneg %p103
      %p246 = pneg %p127
      %p247 = pneg %p124
      %p248 = pneg %p148
      %p249 = pneg %p145
      %p250 = pneg %p174
      %p251 = pneg %p171
      %p252 = scmp.lt.s32.totalorder %s17, 1
      %s253 = scalar_select %p252, %s17, 1
      %s254 = smul.addr %s253, 2
      %s255 = smul.addr %s254, 8
      %s256 = scalar_lea.vmem %s6, %s255
      %p257 = scmp.lt.s32.totalorder %s17, 1
      %s258 = scalar_select %p257, %s17, 1
      %s259 = smul.addr %s258, 6
      %s260 = smul.addr %s259, 8
      %s261 = scalar_lea.vmem %s0, %s260
      %p262 = scmp.lt.s32.totalorder %s17, 1
      %s263 = scalar_select %p262, %s17, 1
      %s264 = smul.addr %s263, 2
      %s265 = smul.addr %s264, 8
      %s266 = scalar_lea.vmem %s1, %s265
      %p267 = scmp.lt.s32.totalorder %s17, 1
      %s268 = scalar_select %p267, %s17, 1
      %s269 = smul.addr %s268, 2
      %s270 = smul.addr %s269, 8
      %s271 = scalar_lea.vmem %s6, %s270
      %v272 = vld [vmem:[%s261] sm:$0xff]
      %v273 = vld [vmem:[%s261 + $0x8] sm:$0xff]
      %v274 = vld [vmem:[%s261 + $0x10] sm:$0xff]
      %v275 = vld [vmem:[%s261 + $0x18] sm:$0xff]
      %v276 = vld [vmem:[%s261 + $0x20] sm:$0x3]
      %v277 = vld [vmem:[%s261 + $0x28] sm:$0x3]
      %v278 = vmax.f32 %v272, 0.0
      %v279 = vmax.f32 %v273, 0.0
      %v280 = vmax.f32 %v274, 0.0
      %v281 = vmax.f32 %v275, 0.0
      %v282 = vmax.f32 %v276, 0.0
      %v283 = vmax.f32 %v277, 0.0
      %v284 = vld [vmem:[%s2] sm:$0xff]
      %v285 = vld [vmem:[%s2 + $0x8] sm:$0xff]
      %v286 = vld [vmem:[%s2 + $0x10] sm:$0xff]
      %v287 = vld [vmem:[%s2 + $0x18] sm:$0xff]
      %v288 = vld [vmem:[%s2 + $0x20] sm:$0xff]
      %v289 = vld [vmem:[%s2 + $0x28] sm:$0xff]
      %v290 = vld [vmem:[%s2 + $0x30] sm:$0xff]
      %v291 = vld [vmem:[%s2 + $0x38] sm:$0xff]
      %v292 = vld [vmem:[%s2 + $0x40] sm:$0xff]
      %v293 = vld [vmem:[%s2 + $0x48] sm:$0xff]
      %v294 = vld [vmem:[%s2 + $0x50] sm:$0xff]
      %v295 = vld [vmem:[%s2 + $0x58] sm:$0xff]
      %v296 = vld [vmem:[%s2 + $0x60] sm:$0xff]
      %v297 = vld [vmem:[%s2 + $0x68] sm:$0xff]
      %v298 = vld [vmem:[%s2 + $0x70] sm:$0xff]
      %v299 = vld [vmem:[%s2 + $0x78] sm:$0xff]
      %v300 = vld [vmem:[%s2 + $0x80] sm:$0xff]
      %v301 = vld [vmem:[%s2 + $0x88] sm:$0xff]
      %s302 = scalar_lea.vmem %s2, 144
      %v303 = vld [vmem:[%s302] sm:$0xff]
      %v304 = vld [vmem:[%s302 + $0x8] sm:$0xff]
      %v305 = vld [vmem:[%s302 + $0x10] sm:$0xff]
      %v306 = vld [vmem:[%s302 + $0x18] sm:$0xff]
      %v307 = vld [vmem:[%s302 + $0x20] sm:$0xff]
      %v308 = vld [vmem:[%s302 + $0x28] sm:$0xff]
      %v309 = vld [vmem:[%s302 + $0x30] sm:$0xff]
      %v310 = vld [vmem:[%s302 + $0x38] sm:$0xff]
      %v311 = vld [vmem:[%s302 + $0x40] sm:$0xff]
      %v312 = vld [vmem:[%s302 + $0x48] sm:$0xff]
      %v313 = vld [vmem:[%s302 + $0x50] sm:$0xff]
      %v314 = vld [vmem:[%s302 + $0x58] sm:$0xff]
      %v315 = vld [vmem:[%s302 + $0x60] sm:$0xff]
      %v316 = vld [vmem:[%s302 + $0x68] sm:$0xff]
      %v317 = vld [vmem:[%s302 + $0x70] sm:$0xff]
      %v318 = vld [vmem:[%s302 + $0x78] sm:$0xff]
      %v319 = vld [vmem:[%s302 + $0x80] sm:$0xff]
      %v320 = vld [vmem:[%s302 + $0x88] sm:$0xff]
      %vm327 = vcmask 1046528
      %v328 = vrot.slane %v278, 1
      %v329 = vrot.slane %v280, 1
      %v330 = vsel %vm327, %v328, %v329
      %v331 = vrot.slane %v279, 1
      %v332 = vrot.slane %v281, 1
      %v333 = vsel %vm327, %v331, %v332
      %v334 = vrot.slane %v282, 1
      %v335 = vsel %vm327, %v329, %v334
      %v336 = vrot.slane %v283, 1
      %v337 = vsel %vm327, %v332, %v336
      %vm340 = vcmask 130048
      %v341 = vsel %vm340, %v333, 0
      %v343 = vsel %vm340, %v337, 0
      %345 = vmatprep.subr.mxu0 0.0
      %346 = vmatpush1.msra.mxu0 %v303
      %347 = vmatprep.subr.mxu0 0.0
      %348 = vmatpush1.msra.mxu0 %v304
      %349 = vmatprep.subr.mxu0 0.0
      %350 = vmatpush1.msra.mxu0 %v305
      %351 = vmatprep.subr.mxu0 0.0
      %352 = vmatpush1.msra.mxu0 %v306
      %353 = vmatprep.subr.mxu0 0.0
      %354 = vmatpush1.msra.mxu0 %v307
      %355 = vmatprep.subr.mxu0 0.0
      %356 = vmatpush1.msra.mxu0 %v308
      %357 = vmatprep.subr.mxu0 0.0
      %358 = vmatpush1.msra.mxu0 %v309
      %359 = vmatprep.subr.mxu0 0.0
      %360 = vmatpush1.msra.mxu0 %v310
      %361 = vmatprep.subr.mxu0 0.0
      %362 = vmatpush1.msra.mxu0 %v311
      %363 = vmatprep.subr.mxu0 0.0
      %364 = vmatpush1.msra.mxu0 %v312
      %365 = vmatprep.subr.mxu0 0.0
      %366 = vmatpush1.msra.mxu0 %v313
      %367 = vmatprep.subr.mxu0 0.0
      %368 = vmatpush1.msra.mxu0 %v314
      %369 = vmatprep.subr.mxu0 0.0
      %370 = vmatpush1.msra.mxu0 %v315
      %371 = vmatprep.subr.mxu0 0.0
      %372 = vmatpush1.msra.mxu0 %v316
      %373 = vmatprep.subr.mxu0 0.0
      %374 = vmatpush1.msra.mxu0 %v317
      %375 = vmatprep.subr.mxu0 0.0
      %376 = vmatpush1.msra.mxu0 %v318
      %377 = vmatprep.subr.mxu0 0.0
      %378 = vmatpush1.msra.mxu0 %v319
      %379 = vmatprep.subr.mxu0 0.0
      %380 = vmatpush1.msra.mxu0 %v320
      %381 = vmatprep.subr.mxu0 0.0
      %382 = vmatpush1.msra.mxu0 0.0
      %383 = vmatprep.subr.mxu0 0.0
      %384 = vmatpush1.msra.mxu0 0.0
      %385 = vmatprep.subr.mxu0 0.0
      %386 = vmatpush1.msra.mxu0 0.0
      %387 = vmatprep.subr.mxu0 0.0
      %388 = vmatpush1.msra.mxu0 0.0
      %389 = vmatprep.subr.mxu0 0.0
      %390 = vmatpush1.msra.mxu0 0.0
      %391 = vmatprep.subr.mxu0 0.0
      %392 = vmatpush1.msra.mxu0 0.0
      %393 = vmatprep.subr.mxu0 0.0
      %394 = vmatpush1.msra.mxu0 0.0
      %395 = vmatprep.subr.mxu0 0.0
      %396 = vmatpush1.msra.mxu0 0.0
      %397 = vmatprep.subr.mxu0 0.0
      %398 = vmatpush1.msra.mxu0 0.0
      %399 = vmatprep.subr.mxu0 0.0
      %400 = vmatpush1.msra.mxu0 0.0
      %401 = vmatprep.subr.mxu0 0.0
      %402 = vmatpush1.msra.mxu0 0.0
      %403 = vmatprep.subr.mxu0 0.0
      %404 = vmatpush1.msra.mxu0 0.0
      %405 = vmatprep.subr.mxu0 0.0
      %406 = vmatpush1.msra.mxu0 0.0
      %407 = vmatprep.subr.mxu0 0.0
      %408 = vmatpush1.msra.mxu0 0.0
      %409 = vmatprep.mubr.f32.mxu0 %v341
      %410 = vmatmul.mubr.f32.gmra.mrb[0].mxu0 %v330
      %v411 = vpop.f32.mrb[0].mxu0
      %v412 = vadd.f32 0.0, %v411
      %v413 = vpop.f32.mrb[0].mxu0
      %414 = vmatprep.mubr.f32.mxu0 %v343
      %415 = vmatmul.mubr.f32.gmra.mrb[0].mxu0 %v335
      %v416 = vpop.f32.mrb[0].mxu0
      %v417 = vadd.f32 0.0, %v416
      %v418 = vpop.f32.mrb[0].mxu0
      %419 = vdwg.mxu0
      %v420 = vsel %vm340, %v279, 0
      %v422 = vsel %vm340, %v281, 0
      %424 = vmatprep.subr.mxu0 0.0
      %425 = vmatpush1.msra.mxu0 %v284
      %426 = vmatprep.subr.mxu0 0.0
      %427 = vmatpush1.msra.mxu0 %v285
      %428 = vmatprep.subr.mxu0 0.0
      %429 = vmatpush1.msra.mxu0 %v286
      %430 = vmatprep.subr.mxu0 0.0
      %431 = vmatpush1.msra.mxu0 %v287
      %432 = vmatprep.subr.mxu0 0.0
      %433 = vmatpush1.msra.mxu0 %v288
      %434 = vmatprep.subr.mxu0 0.0
      %435 = vmatpush1.msra.mxu0 %v289
      %436 = vmatprep.subr.mxu0 0.0
      %437 = vmatpush1.msra.mxu0 %v290
      %438 = vmatprep.subr.mxu0 0.0
      %439 = vmatpush1.msra.mxu0 %v291
      %440 = vmatprep.subr.mxu0 0.0
      %441 = vmatpush1.msra.mxu0 %v292
      %442 = vmatprep.subr.mxu0 0.0
      %443 = vmatpush1.msra.mxu0 %v293
      %444 = vmatprep.subr.mxu0 0.0
      %445 = vmatpush1.msra.mxu0 %v294
      %446 = vmatprep.subr.mxu0 0.0
      %447 = vmatpush1.msra.mxu0 %v295
      %448 = vmatprep.subr.mxu0 0.0
      %449 = vmatpush1.msra.mxu0 %v296
      %450 = vmatprep.subr.mxu0 0.0
      %451 = vmatpush1.msra.mxu0 %v297
      %452 = vmatprep.subr.mxu0 0.0
      %453 = vmatpush1.msra.mxu0 %v298
      %454 = vmatprep.subr.mxu0 0.0
      %455 = vmatpush1.msra.mxu0 %v299
      %456 = vmatprep.subr.mxu0 0.0
      %457 = vmatpush1.msra.mxu0 %v300
      %458 = vmatprep.subr.mxu0 0.0
      %459 = vmatpush1.msra.mxu0 %v301
      %460 = vmatprep.subr.mxu0 0.0
      %461 = vmatpush1.msra.mxu0 0.0
      %462 = vmatprep.subr.mxu0 0.0
      %463 = vmatpush1.msra.mxu0 0.0
      %464 = vmatprep.subr.mxu0 0.0
      %465 = vmatpush1.msra.mxu0 0.0
      %466 = vmatprep.subr.mxu0 0.0
      %467 = vmatpush1.msra.mxu0 0.0
      %468 = vmatprep.subr.mxu0 0.0
      %469 = vmatpush1.msra.mxu0 0.0
      %470 = vmatprep.subr.mxu0 0.0
      %471 = vmatpush1.msra.mxu0 0.0
      %472 = vmatprep.subr.mxu0 0.0
      %473 = vmatpush1.msra.mxu0 0.0
      %474 = vmatprep.subr.mxu0 0.0
      %475 = vmatpush1.msra.mxu0 0.0
      %476 = vmatprep.subr.mxu0 0.0
      %477 = vmatpush1.msra.mxu0 0.0
      %478 = vmatprep.subr.mxu0 0.0
      %479 = vmatpush1.msra.mxu0 0.0
      %480 = vmatprep.subr.mxu0 0.0
      %481 = vmatpush1.msra.mxu0 0.0
      %482 = vmatprep.subr.mxu0 0.0
      %483 = vmatpush1.msra.mxu0 0.0
      %484 = vmatprep.subr.mxu0 0.0
      %485 = vmatpush1.msra.mxu0 0.0
      %486 = vmatprep.subr.mxu0 0.0
      %487 = vmatpush1.msra.mxu0 0.0
      %488 = vmatprep.mubr.f32.mxu0 %v420
      %489 = vmatmul.mubr.f32.gmra.mrb[0].mxu0 %v278
      %v490 = vpop.f32.mrb[0].mxu0
      %v491 = vadd.f32 %v412, %v490
      %v492 = vpop.f32.mrb[0].mxu0
      %493 = vmatprep.mubr.f32.mxu0 %v422
      %494 = vmatmul.mubr.f32.gmra.mrb[0].mxu0 %v280
      %v495 = vpop.f32.mrb[0].mxu0
      %v496 = vadd.f32 %v417, %v495
      %v497 = vpop.f32.mrb[0].mxu0
      %498 = vdwg.mxu0
      %s499 = scalar_lea.vmem %s2, 288
      %v500 = vld [vmem:[%s499] sm:$0xff]
      %v501 = vld [vmem:[%s499 + $0x8] sm:$0xff]
      %v502 = vld [vmem:[%s499 + $0x10] sm:$0xff]
      %v503 = vld [vmem:[%s499 + $0x18] sm:$0xff]
      %v504 = vld [vmem:[%s499 + $0x20] sm:$0xff]
      %v505 = vld [vmem:[%s499 + $0x28] sm:$0xff]
      %v506 = vld [vmem:[%s499 + $0x30] sm:$0xff]
      %v507 = vld [vmem:[%s499 + $0x38] sm:$0xff]
      %v508 = vld [vmem:[%s499 + $0x40] sm:$0xff]
      %v509 = vld [vmem:[%s499 + $0x48] sm:$0xff]
      %v510 = vld [vmem:[%s499 + $0x50] sm:$0xff]
      %v511 = vld [vmem:[%s499 + $0x58] sm:$0xff]
      %v512 = vld [vmem:[%s499 + $0x60] sm:$0xff]
      %v513 = vld [vmem:[%s499 + $0x68] sm:$0xff]
      %v514 = vld [vmem:[%s499 + $0x70] sm:$0xff]
      %v515 = vld [vmem:[%s499 + $0x78] sm:$0xff]
      %v516 = vld [vmem:[%s499 + $0x80] sm:$0xff]
      %v517 = vld [vmem:[%s499 + $0x88] sm:$0xff]
      %vm518 = vcmask 1045504
      %v519 = vrot.slane %v278, 2
      %v520 = vrot.slane %v280, 2
      %v521 = vsel %vm518, %v519, %v520
      %v522 = vrot.slane %v279, 2
      %v523 = vrot.slane %v281, 2
      %v524 = vsel %vm518, %v522, %v523
      %v525 = vrot.slane %v282, 2
      %v526 = vsel %vm518, %v520, %v525
      %v527 = vrot.slane %v283, 2
      %v528 = vsel %vm518, %v523, %v527
      %v531 = vsel %vm340, %v524, 0
      %v533 = vsel %vm340, %v528, 0
      %535 = vmatprep.subr.mxu0 0.0
      %536 = vmatpush1.msra.mxu0 %v500
      %537 = vmatprep.subr.mxu0 0.0
      %538 = vmatpush1.msra.mxu0 %v501
      %539 = vmatprep.subr.mxu0 0.0
      %540 = vmatpush1.msra.mxu0 %v502
      %541 = vmatprep.subr.mxu0 0.0
      %542 = vmatpush1.msra.mxu0 %v503
      %543 = vmatprep.subr.mxu0 0.0
      %544 = vmatpush1.msra.mxu0 %v504
      %545 = vmatprep.subr.mxu0 0.0
      %546 = vmatpush1.msra.mxu0 %v505
      %547 = vmatprep.subr.mxu0 0.0
      %548 = vmatpush1.msra.mxu0 %v506
      %549 = vmatprep.subr.mxu0 0.0
      %550 = vmatpush1.msra.mxu0 %v507
      %551 = vmatprep.subr.mxu0 0.0
      %552 = vmatpush1.msra.mxu0 %v508
      %553 = vmatprep.subr.mxu0 0.0
      %554 = vmatpush1.msra.mxu0 %v509
      %555 = vmatprep.subr.mxu0 0.0
      %556 = vmatpush1.msra.mxu0 %v510
      %557 = vmatprep.subr.mxu0 0.0
      %558 = vmatpush1.msra.mxu0 %v511
      %559 = vmatprep.subr.mxu0 0.0
      %560 = vmatpush1.msra.mxu0 %v512
      %561 = vmatprep.subr.mxu0 0.0
      %562 = vmatpush1.msra.mxu0 %v513
      %563 = vmatprep.subr.mxu0 0.0
      %564 = vmatpush1.msra.mxu0 %v514
      %565 = vmatprep.subr.mxu0 0.0
      %566 = vmatpush1.msra.mxu0 %v515
      %567 = vmatprep.subr.mxu0 0.0
      %568 = vmatpush1.msra.mxu0 %v516
      %569 = vmatprep.subr.mxu0 0.0
      %570 = vmatpush1.msra.mxu0 %v517
      %571 = vmatprep.subr.mxu0 0.0
      %572 = vmatpush1.msra.mxu0 0.0
      %573 = vmatprep.subr.mxu0 0.0
      %574 = vmatpush1.msra.mxu0 0.0
      %575 = vmatprep.subr.mxu0 0.0
      %576 = vmatpush1.msra.mxu0 0.0
      %577 = vmatprep.subr.mxu0 0.0
      %578 = vmatpush1.msra.mxu0 0.0
      %579 = vmatprep.subr.mxu0 0.0
      %580 = vmatpush1.msra.mxu0 0.0
      %581 = vmatprep.subr.mxu0 0.0
      %582 = vmatpush1.msra.mxu0 0.0
      %583 = vmatprep.subr.mxu0 0.0
      %584 = vmatpush1.msra.mxu0 0.0
      %585 = vmatprep.subr.mxu0 0.0
      %586 = vmatpush1.msra.mxu0 0.0
      %587 = vmatprep.subr.mxu0 0.0
      %588 = vmatpush1.msra.mxu0 0.0
      %589 = vmatprep.subr.mxu0 0.0
      %590 = vmatpush1.msra.mxu0 0.0
      %591 = vmatprep.subr.mxu0 0.0
      %592 = vmatpush1.msra.mxu0 0.0
      %593 = vmatprep.subr.mxu0 0.0
      %594 = vmatpush1.msra.mxu0 0.0
      %595 = vmatprep.subr.mxu0 0.0
      %596 = vmatpush1.msra.mxu0 0.0
      %597 = vmatprep.subr.mxu0 0.0
      %598 = vmatpush1.msra.mxu0 0.0
      %599 = vmatprep.mubr.f32.mxu0 %v531
      %600 = vmatmul.mubr.f32.gmra.mrb[0].mxu0 %v521
      %v601 = vpop.f32.mrb[0].mxu0
      %v602 = vadd.f32 0.0, %v601
      %v603 = vpop.f32.mrb[0].mxu0
      %604 = vmatprep.mubr.f32.mxu0 %v533
      %605 = vmatmul.mubr.f32.gmra.mrb[0].mxu0 %v526
      %v606 = vpop.f32.mrb[0].mxu0
      %v607 = vadd.f32 0.0, %v606
      %v608 = vpop.f32.mrb[0].mxu0
      %609 = vdwg.mxu0
      %v610 = vadd.f32 %v491, %v602
      %v611 = vadd.f32 %v496, %v607
      %v612 = vld [vmem:[%s3] sm:$0x1]
      %v614 = vlaneseq
      %v615 = vshrl.u32 %v614, 7
      %v616 = vsub.s32 0, %v615
      %v617 = vrot.slane %v612, %v616
      %v619 = vadd.f32 %v610, %v617
      %v620 = vadd.f32 %v611, %v617
      %v621 = vmax.f32 %v619, 0.0
      %v622 = vmax.f32 %v620, 0.0
      %v623 = vld [vmem:[%s4] sm:$0xff]
      %v624 = vld [vmem:[%s4 + $0x8] sm:$0xff]
      %v625 = vld [vmem:[%s4 + $0x10] sm:$0xff]
      %v626 = vld [vmem:[%s4 + $0x18] sm:$0xff]
      %v627 = vld [vmem:[%s4 + $0x20] sm:$0xff]
      %v628 = vld [vmem:[%s4 + $0x28] sm:$0xff]
      %v629 = vld [vmem:[%s4 + $0x30] sm:$0xff]
      %v630 = vld [vmem:[%s4 + $0x38] sm:$0xff]
      %v631 = vld [vmem:[%s4 + $0x40] sm:$0xff]
      %v632 = vld [vmem:[%s4 + $0x48] sm:$0xff]
      %v633 = vld [vmem:[%s4 + $0x50] sm:$0xff]
      %v634 = vld [vmem:[%s4 + $0x58] sm:$0xff]
      %v635 = vld [vmem:[%s4 + $0x60] sm:$0xff]
      %v636 = vld [vmem:[%s4 + $0x68] sm:$0xff]
      %v637 = vld [vmem:[%s4 + $0x70] sm:$0xff]
      %v638 = vld [vmem:[%s4 + $0x78] sm:$0xff]
      %v639 = vld [vmem:[%s5] sm:$0x1]
      %v641 = vlaneseq
      %v642 = vshrl.u32 %v641, 7
      %v643 = vsub.s32 0, %v642
      %v644 = vrot.slane %v639, %v643
      %646 = vmatprep.subr.mxu0 0.0
      %647 = vmatpush1.msra.mxu0 %v623
      %648 = vmatprep.subr.mxu0 0.0
      %649 = vmatpush1.msra.mxu0 %v624
      %650 = vmatprep.subr.mxu0 0.0
      %651 = vmatpush1.msra.mxu0 %v625
      %652 = vmatprep.subr.mxu0 0.0
      %653 = vmatpush1.msra.mxu0 %v626
      %654 = vmatprep.subr.mxu0 0.0
      %655 = vmatpush1.msra.mxu0 %v627
      %656 = vmatprep.subr.mxu0 0.0
      %657 = vmatpush1.msra.mxu0 %v628
      %658 = vmatprep.subr.mxu0 0.0
      %659 = vmatpush1.msra.mxu0 %v629
      %660 = vmatprep.subr.mxu0 0.0
      %661 = vmatpush1.msra.mxu0 %v630
      %662 = vmatprep.subr.mxu0 0.0
      %663 = vmatpush1.msra.mxu0 %v631
      %664 = vmatprep.subr.mxu0 0.0
      %665 = vmatpush1.msra.mxu0 %v632
      %666 = vmatprep.subr.mxu0 0.0
      %667 = vmatpush1.msra.mxu0 %v633
      %668 = vmatprep.subr.mxu0 0.0
      %669 = vmatpush1.msra.mxu0 %v634
      %670 = vmatprep.subr.mxu0 0.0
      %671 = vmatpush1.msra.mxu0 %v635
      %672 = vmatprep.subr.mxu0 0.0
      %673 = vmatpush1.msra.mxu0 %v636
      %674 = vmatprep.subr.mxu0 0.0
      %675 = vmatpush1.msra.mxu0 %v637
      %676 = vmatprep.subr.mxu0 0.0
      %677 = vmatpush1.msra.mxu0 %v638
      %678 = vmatprep.subr.mxu0 0.0
      %679 = vmatpush1.msra.mxu0 0.0
      %680 = vmatprep.subr.mxu0 0.0
      %681 = vmatpush1.msra.mxu0 0.0
      %682 = vmatprep.subr.mxu0 0.0
      %683 = vmatpush1.msra.mxu0 0.0
      %684 = vmatprep.subr.mxu0 0.0
      %685 = vmatpush1.msra.mxu0 0.0
      %686 = vmatprep.subr.mxu0 0.0
      %687 = vmatpush1.msra.mxu0 0.0
      %688 = vmatprep.subr.mxu0 0.0
      %689 = vmatpush1.msra.mxu0 0.0
      %690 = vmatprep.subr.mxu0 0.0
      %691 = vmatpush1.msra.mxu0 0.0
      %692 = vmatprep.subr.mxu0 0.0
      %693 = vmatpush1.msra.mxu0 0.0
      %694 = vmatprep.subr.mxu0 0.0
      %695 = vmatpush1.msra.mxu0 0.0
      %696 = vmatprep.subr.mxu0 0.0
      %697 = vmatpush1.msra.mxu0 0.0
      %698 = vmatprep.subr.mxu0 0.0
      %699 = vmatpush1.msra.mxu0 0.0
      %700 = vmatprep.subr.mxu0 0.0
      %701 = vmatpush1.msra.mxu0 0.0
      %702 = vmatprep.subr.mxu0 0.0
      %703 = vmatpush1.msra.mxu0 0.0
      %704 = vmatprep.subr.mxu0 0.0
      %705 = vmatpush1.msra.mxu0 0.0
      %706 = vmatprep.subr.mxu0 0.0
      %707 = vmatpush1.msra.mxu0 0.0
      %708 = vmatprep.subr.mxu0 0.0
      %709 = vmatpush1.msra.mxu0 0.0
      %710 = vmatprep.mubr.f32.mxu0 0.0
      %711 = vmatmul.mubr.f32.gmra.mrb[0].mxu0 %v621
      %v712 = vpop.f32.mrb[0].mxu0
      %v713 = vadd.f32 %v644, %v712
      %v714 = vpop.f32.mrb[0].mxu0
      %715 = vmatprep.mubr.f32.mxu0 0.0
      %716 = vmatmul.mubr.f32.gmra.mrb[0].mxu0 %v622
      %v717 = vpop.f32.mrb[0].mxu0
      %v718 = vadd.f32 %v644, %v717
      %v719 = vpop.f32.mrb[0].mxu0
      %720 = vdwg.mxu0
      %v721 = vld [vmem:[%s266] sm:$0xff]
      %v722 = vld [vmem:[%s266 + $0x8] sm:$0xff]
      %v723 = vadd.f32 %v721, %v713
      %v724 = vadd.f32 %v722, %v718
      %725 = vst [vmem:[%s271] sm:$0xff] %v723
      %726 = vst [vmem:[%s271 + $0x8] sm:$0xff] %v724
      %p727 = scmp.lt.s32.totalorder %s17, 1
      %s728 = scalar_select %p727, %s17, 1
      %s729 = smul.addr %s728, 2
      %s730 = smul.addr %s729, 8
      %s731 = scalar_lea.vmem %s6, %s730
      // Predicated region
      $region45: #{resblock_pallas.1} parent=43 // pred_check
        %p732 = pneg %p171
      $region46: #{resblock_pallas.1} parent=43 // pred_check_branch
        %734 = sbr.rel (%p732) target = $region48
      $region47: #{resblock_pallas.1} parent=43 // pred_region
        _
      $region48: #{resblock_pallas.1} parent=43 // pred_fallthru
        _
    $region44: #{resblock_pallas.1} parent=5 // pred_fallthru
      _
    %p735 = scmp.le.s32.totalorder 2, %s12
    // Predicated region
    $region49: #{resblock_pallas.1} parent=5 // pred_check
      %p736 = pneg %p735
    $region50: #{resblock_pallas.1} parent=5 // pred_check_branch
      %738 = sbr.rel (%p736) target = $region52
    $region51: #{resblock_pallas.1} parent=5 // pred_region
      %s739 = ssub.s32 %s12, 2
      // Predicated region
      $region53: #{resblock_pallas.1} parent=51 // pred_check
        %p740 = pneg %p177
      $region54: #{resblock_pallas.1} parent=51 // pred_check_branch
        %742 = sbr.rel (%p740) target = $region56
      $region55: #{resblock_pallas.1} parent=51 // pred_region
        %p743 = scmp.lt.s32.totalorder %s18, 1
        %s744 = scalar_select %p743, %s18, 1
        %s745 = smul.addr %s744, 2
        %s746 = smul.addr %s745, 8
        %s747 = scalar_lea.vmem %s6, %s746
      $region56: #{resblock_pallas.1} parent=51 // pred_fallthru
        _
    $region52: #{resblock_pallas.1} parent=5 // pred_fallthru
      _
  $region6: #{resblock_pallas.1} parent=0 // loop_footer
    %s16 = sadd.s32 1, %s12
  $region7: #{resblock_pallas.1} parent=0 // loop_footer_branch
    %11 = sbr.rel target = $region3
  $region8: #{resblock_pallas.1} parent=0 // loop_exit
    _

</llo_original>
